<compile_context>
chip_gen: v6e
topology: v6e:2x2x1
jax: 0.10.0
libtpu: 0.0.40
codegen_flags: <defaults>
</compile_context>

<pallas_src>
import functools

import jax
import jax.numpy as jnp
from jax.experimental import pallas as pl
from jax.experimental.pallas import tpu as pltpu


def _make_kernel(K, OW, outc_pad, s, d):
    """Builds the fused conv + BN-affine + ReLU kernel.

    Refs (in order):
      x_refs[kh] : (1, 1, Wp, C)   bf16  -- padded input row (oh*s + kh*d) of image n
      w_ref      : (K*K, C, outc_pad) bf16 -- conv weight, BN scale folded in
      shift_ref  : (1, outc_pad)   f32   -- fused BN shift (beta - mean*scale)
      o_ref      : (1, 1, OW, outc_pad) f32
    """

    def kernel(*refs):
        x_refs = refs[:K]
        w_ref = refs[K]
        shift_ref = refs[K + 1]
        o_ref = refs[K + 2]

        acc = jnp.zeros((OW, outc_pad), dtype=jnp.float32)
        for kh in range(K):
            for kw in range(K):
                if s == 1:
                    patch = x_refs[kh][0, 0, kw * d: kw * d + OW, :]       # (OW, C)
                else:
                    patch = x_refs[kh][0, 0, pl.ds(kw * d, OW, stride=s), :]
                acc = acc + jnp.dot(patch, w_ref[kh * K + kw],
                                    preferred_element_type=jnp.float32)
        y = acc + shift_ref[...]
        o_ref[0, 0] = jnp.maximum(y, 0.0).astype(o_ref.dtype)

    return kernel


@functools.partial(jax.jit, static_argnames=("k", "p", "s", "d"))
def conv_layer_forward(x, weight, gamma, beta, run_mean, run_var,
                       *, k=3, p=1, s=1, d=1, eps=1e-5):
    """x: (N, C, H, W) float32, weight: (outc, C, k, k). Returns (N, outc, OH, OW)."""
    n, c, h, w = x.shape
    outc = weight.shape[0]

    # NCHW -> NHWC once, reflect-pad spatial dims (padding_mode='reflect';
    # like PyTorch this requires p < H and p < W).
    x_nhwc = jnp.transpose(x, (0, 2, 3, 1))
    xp = jnp.pad(x_nhwc, ((0, 0), (p, p), (p, p), (0, 0)), mode="reflect")
    hp, wp = h + 2 * p, w + 2 * p
    oh = (hp - d * (k - 1) - 1) // s + 1
    ow = (wp - d * (k - 1) - 1) // s + 1

    xp = xp.astype(jnp.bfloat16)

    # Fuse BatchNorm (eval mode): fold scale into the weights, keep shift as a
    # per-channel add in the kernel epilogue.
    scale = gamma / jnp.sqrt(run_var + eps)
    shift = beta - run_mean * scale

    # Pad output channels to a multiple of 128 for lane-dense stores.
    outc_pad = ((outc + 127) // 128) * 128
    wf = weight * scale[:, None, None, None]                       # (outc, C, k, k)
    wf = jnp.pad(wf, ((0, outc_pad - outc), (0, 0), (0, 0), (0, 0)))
    w_mat = jnp.transpose(wf, (2, 3, 1, 0)).reshape(k * k, c, outc_pad)
    w_mat = w_mat.astype(jnp.bfloat16)
    shift_p = jnp.pad(shift, (0, outc_pad - outc)).reshape(1, outc_pad)
    shift_p = shift_p.astype(jnp.float32)

    kernel = _make_kernel(k, ow, outc_pad, s, d)

    # One BlockSpec per kernel row: each is a row-shifted view of the SAME
    # padded NHWC tensor (block size 1 along H, so the index_map returns the
    # element row index directly).
    in_specs = []
    for kh in range(k):
        in_specs.append(
            pl.BlockSpec((1, 1, wp, c),
                         lambda ni, ohi, kh=kh: (ni, ohi * s + kh * d, 0, 0)))
    in_specs.append(pl.BlockSpec((k * k, c, outc_pad), lambda ni, ohi: (0, 0, 0)))
    in_specs.append(pl.BlockSpec((1, outc_pad), lambda ni, ohi: (0, 0)))

    out = pl.pallas_call(
        kernel,
        out_shape=jax.ShapeDtypeStruct((n, oh, ow, outc_pad), jnp.float32),
        grid_spec=pltpu.PrefetchScalarGridSpec(
            num_scalar_prefetch=0,
            grid=(n, oh),
            in_specs=in_specs,
            out_specs=pl.BlockSpec((1, 1, ow, outc_pad),
                                   lambda ni, ohi: (ni, ohi, 0, 0)),
        ),
        compiler_params=pltpu.CompilerParams(
            dimension_semantics=("parallel", "parallel")),
    )(*([xp] * k), w_mat, shift_p)

    out = out[:, :, :, :outc]                      # drop channel padding
    out = jnp.transpose(out, (0, 3, 1, 2))         # NHWC -> NCHW (module interface)
    # TODO(synk): Dropout2d is identity in eval mode; train-mode channel dropout
    # (RNG + 1/(1-p) rescale) and BatchNorm train-mode batch statistics are not
    # implemented here.
    return out


if __name__ == "__main__":
    key = jax.random.PRNGKey(0)
    k_x, k_w, k_g, k_b, k_m, k_v = jax.random.split(key, 6)

    N, INC, OUTC, H, W = 2, 4, 8, 16, 16
    K, P, S, D = 3, 1, 1, 1

    x = jax.random.normal(k_x, (N, INC, H, W), dtype=jnp.float32)
    weight = jax.random.normal(k_w, (OUTC, INC, K, K), dtype=jnp.float32) * 0.1
    gamma = 1.0 + 0.1 * jax.random.normal(k_g, (OUTC,), dtype=jnp.float32)
    beta = 0.1 * jax.random.normal(k_b, (OUTC,), dtype=jnp.float32)
    run_mean = 0.05 * jax.random.normal(k_m, (OUTC,), dtype=jnp.float32)
    run_var = 1.0 + 0.1 * jnp.abs(jax.random.normal(k_v, (OUTC,), dtype=jnp.float32))

    y = conv_layer_forward(x, weight, gamma, beta, run_mean, run_var,
                           k=K, p=P, s=S, d=D)
    jax.block_until_ready(y)
    assert y.shape == (N, OUTC, H, W), y.shape
    print("KERNEL_OK")
</pallas_src>

<mosaic_0001>
module attributes {stable_mosaic.version = 11 : i64} {
  func.func @kernel(%arg0: i32, %arg1: i32, %arg2: memref<1x1x18x4xbf16, #tpu.memory_space<vmem>>, %arg3: memref<1x1x18x4xbf16, #tpu.memory_space<vmem>>, %arg4: memref<1x1x18x4xbf16, #tpu.memory_space<vmem>>, %arg5: memref<9x4x128xbf16, #tpu.memory_space<vmem>>, %arg6: memref<1x128xf32, #tpu.memory_space<vmem>>, %arg7: memref<1x1x16x128xf32, #tpu.memory_space<vmem>>) attributes {dimension_semantics = [#tpu.dimension_semantics<parallel>, #tpu.dimension_semantics<parallel>], iteration_bounds = array<i64: 2, 16>, scalar_prefetch = 0 : i64, scratch_operands = 0 : i64, tpu.core_type = #tpu.core_type<tc>, window_params = [{transform_indices = @transform_0, window_bounds = array<i64: 1, 1, 18, 4>}, {transform_indices = @transform_1, window_bounds = array<i64: 1, 1, 18, 4>}, {transform_indices = @transform_2, window_bounds = array<i64: 1, 1, 18, 4>}, {pipeline_mode = #tpu.pipeline_mode<synchronous>, transform_indices = @transform_3, window_bounds = array<i64: 9, 4, 128>}, {pipeline_mode = #tpu.pipeline_mode<synchronous>, transform_indices = @transform_4, window_bounds = array<i64: 1, 128>}, {transform_indices = @transform_5, window_bounds = array<i64: 1, 1, 16, 128>}]} {
    %cst = arith.constant 0.000000e+00 : f32
    %0 = vector.broadcast %cst : f32 to vector<16x128xf32>
    %c0 = arith.constant 0 : index
    %c0_0 = arith.constant 0 : index
    %c0_1 = arith.constant 0 : index
    %c0_2 = arith.constant 0 : index
    %1 = vector.load %arg2[%c0, %c0_0, %c0_1, %c0_2] : memref<1x1x18x4xbf16, #tpu.memory_space<vmem>>, vector<1x1x16x4xbf16>
    %2 = vector.shape_cast %1 : vector<1x1x16x4xbf16> to vector<16x4xbf16>
    %c0_3 = arith.constant 0 : index
    %c0_4 = arith.constant 0 : index
    %c0_5 = arith.constant 0 : index
    %3 = vector.load %arg5[%c0_3, %c0_4, %c0_5] : memref<9x4x128xbf16, #tpu.memory_space<vmem>>, vector<1x4x128xbf16>
    %4 = vector.shape_cast %3 : vector<1x4x128xbf16> to vector<4x128xbf16>
    %cst_6 = arith.constant dense<0.000000e+00> : vector<16x128xf32>
    %5 = tpu.matmul %2, %4, %cst_6 {dimension_numbers = #tpu.dot_dimension_numbers<[1], [0], [0], [1], [0, 0, 1, 1], [], []>} : vector<16x4xbf16>, vector<4x128xbf16>, vector<16x128xf32> -> vector<16x128xf32>
    %6 = arith.addf %0, %5 : vector<16x128xf32>
    %c0_7 = arith.constant 0 : index
    %c0_8 = arith.constant 0 : index
    %c1 = arith.constant 1 : index
    %c0_9 = arith.constant 0 : index
    %7 = vector.load %arg2[%c0_7, %c0_8, %c1, %c0_9] : memref<1x1x18x4xbf16, #tpu.memory_space<vmem>>, vector<1x1x16x4xbf16>
    %8 = vector.shape_cast %7 : vector<1x1x16x4xbf16> to vector<16x4xbf16>
    %c1_10 = arith.constant 1 : index
    %c0_11 = arith.constant 0 : index
    %c0_12 = arith.constant 0 : index
    %9 = vector.load %arg5[%c1_10, %c0_11, %c0_12] : memref<9x4x128xbf16, #tpu.memory_space<vmem>>, vector<1x4x128xbf16>
    %10 = vector.shape_cast %9 : vector<1x4x128xbf16> to vector<4x128xbf16>
    %cst_13 = arith.constant dense<0.000000e+00> : vector<16x128xf32>
    %11 = tpu.matmul %8, %10, %cst_13 {dimension_numbers = #tpu.dot_dimension_numbers<[1], [0], [0], [1], [0, 0, 1, 1], [], []>} : vector<16x4xbf16>, vector<4x128xbf16>, vector<16x128xf32> -> vector<16x128xf32>
    %12 = arith.addf %6, %11 : vector<16x128xf32>
    %c0_14 = arith.constant 0 : index
    %c0_15 = arith.constant 0 : index
    %c2 = arith.constant 2 : index
    %c0_16 = arith.constant 0 : index
    %13 = vector.load %arg2[%c0_14, %c0_15, %c2, %c0_16] : memref<1x1x18x4xbf16, #tpu.memory_space<vmem>>, vector<1x1x16x4xbf16>
    %14 = vector.shape_cast %13 : vector<1x1x16x4xbf16> to vector<16x4xbf16>
    %c2_17 = arith.constant 2 : index
    %c0_18 = arith.constant 0 : index
    %c0_19 = arith.constant 0 : index
    %15 = vector.load %arg5[%c2_17, %c0_18, %c0_19] : memref<9x4x128xbf16, #tpu.memory_space<vmem>>, vector<1x4x128xbf16>
    %16 = vector.shape_cast %15 : vector<1x4x128xbf16> to vector<4x128xbf16>
    %cst_20 = arith.constant dense<0.000000e+00> : vector<16x128xf32>
    %17 = tpu.matmul %14, %16, %cst_20 {dimension_numbers = #tpu.dot_dimension_numbers<[1], [0], [0], [1], [0, 0, 1, 1], [], []>} : vector<16x4xbf16>, vector<4x128xbf16>, vector<16x128xf32> -> vector<16x128xf32>
    %18 = arith.addf %12, %17 : vector<16x128xf32>
    %c0_21 = arith.constant 0 : index
    %c0_22 = arith.constant 0 : index
    %c0_23 = arith.constant 0 : index
    %c0_24 = arith.constant 0 : index
    %19 = vector.load %arg3[%c0_21, %c0_22, %c0_23, %c0_24] : memref<1x1x18x4xbf16, #tpu.memory_space<vmem>>, vector<1x1x16x4xbf16>
    %20 = vector.shape_cast %19 : vector<1x1x16x4xbf16> to vector<16x4xbf16>
    %c3 = arith.constant 3 : index
    %c0_25 = arith.constant 0 : index
    %c0_26 = arith.constant 0 : index
    %21 = vector.load %arg5[%c3, %c0_25, %c0_26] : memref<9x4x128xbf16, #tpu.memory_space<vmem>>, vector<1x4x128xbf16>
    %22 = vector.shape_cast %21 : vector<1x4x128xbf16> to vector<4x128xbf16>
    %cst_27 = arith.constant dense<0.000000e+00> : vector<16x128xf32>
    %23 = tpu.matmul %20, %22, %cst_27 {dimension_numbers = #tpu.dot_dimension_numbers<[1], [0], [0], [1], [0, 0, 1, 1], [], []>} : vector<16x4xbf16>, vector<4x128xbf16>, vector<16x128xf32> -> vector<16x128xf32>
    %24 = arith.addf %18, %23 : vector<16x128xf32>
    %c0_28 = arith.constant 0 : index
    %c0_29 = arith.constant 0 : index
    %c1_30 = arith.constant 1 : index
    %c0_31 = arith.constant 0 : index
    %25 = vector.load %arg3[%c0_28, %c0_29, %c1_30, %c0_31] : memref<1x1x18x4xbf16, #tpu.memory_space<vmem>>, vector<1x1x16x4xbf16>
    %26 = vector.shape_cast %25 : vector<1x1x16x4xbf16> to vector<16x4xbf16>
    %c4 = arith.constant 4 : index
    %c0_32 = arith.constant 0 : index
    %c0_33 = arith.constant 0 : index
    %27 = vector.load %arg5[%c4, %c0_32, %c0_33] : memref<9x4x128xbf16, #tpu.memory_space<vmem>>, vector<1x4x128xbf16>
    %28 = vector.shape_cast %27 : vector<1x4x128xbf16> to vector<4x128xbf16>
    %cst_34 = arith.constant dense<0.000000e+00> : vector<16x128xf32>
    %29 = tpu.matmul %26, %28, %cst_34 {dimension_numbers = #tpu.dot_dimension_numbers<[1], [0], [0], [1], [0, 0, 1, 1], [], []>} : vector<16x4xbf16>, vector<4x128xbf16>, vector<16x128xf32> -> vector<16x128xf32>
    %30 = arith.addf %24, %29 : vector<16x128xf32>
    %c0_35 = arith.constant 0 : index
    %c0_36 = arith.constant 0 : index
    %c2_37 = arith.constant 2 : index
    %c0_38 = arith.constant 0 : index
    %31 = vector.load %arg3[%c0_35, %c0_36, %c2_37, %c0_38] : memref<1x1x18x4xbf16, #tpu.memory_space<vmem>>, vector<1x1x16x4xbf16>
    %32 = vector.shape_cast %31 : vector<1x1x16x4xbf16> to vector<16x4xbf16>
    %c5 = arith.constant 5 : index
    %c0_39 = arith.constant 0 : index
    %c0_40 = arith.constant 0 : index
    %33 = vector.load %arg5[%c5, %c0_39, %c0_40] : memref<9x4x128xbf16, #tpu.memory_space<vmem>>, vector<1x4x128xbf16>
    %34 = vector.shape_cast %33 : vector<1x4x128xbf16> to vector<4x128xbf16>
    %cst_41 = arith.constant dense<0.000000e+00> : vector<16x128xf32>
    %35 = tpu.matmul %32, %34, %cst_41 {dimension_numbers = #tpu.dot_dimension_numbers<[1], [0], [0], [1], [0, 0, 1, 1], [], []>} : vector<16x4xbf16>, vector<4x128xbf16>, vector<16x128xf32> -> vector<16x128xf32>
    %36 = arith.addf %30, %35 : vector<16x128xf32>
    %c0_42 = arith.constant 0 : index
    %c0_43 = arith.constant 0 : index
    %c0_44 = arith.constant 0 : index
    %c0_45 = arith.constant 0 : index
    %37 = vector.load %arg4[%c0_42, %c0_43, %c0_44, %c0_45] : memref<1x1x18x4xbf16, #tpu.memory_space<vmem>>, vector<1x1x16x4xbf16>
    %38 = vector.shape_cast %37 : vector<1x1x16x4xbf16> to vector<16x4xbf16>
    %c6 = arith.constant 6 : index
    %c0_46 = arith.constant 0 : index
    %c0_47 = arith.constant 0 : index
    %39 = vector.load %arg5[%c6, %c0_46, %c0_47] : memref<9x4x128xbf16, #tpu.memory_space<vmem>>, vector<1x4x128xbf16>
    %40 = vector.shape_cast %39 : vector<1x4x128xbf16> to vector<4x128xbf16>
    %cst_48 = arith.constant dense<0.000000e+00> : vector<16x128xf32>
    %41 = tpu.matmul %38, %40, %cst_48 {dimension_numbers = #tpu.dot_dimension_numbers<[1], [0], [0], [1], [0, 0, 1, 1], [], []>} : vector<16x4xbf16>, vector<4x128xbf16>, vector<16x128xf32> -> vector<16x128xf32>
    %42 = arith.addf %36, %41 : vector<16x128xf32>
    %c0_49 = arith.constant 0 : index
    %c0_50 = arith.constant 0 : index
    %c1_51 = arith.constant 1 : index
    %c0_52 = arith.constant 0 : index
    %43 = vector.load %arg4[%c0_49, %c0_50, %c1_51, %c0_52] : memref<1x1x18x4xbf16, #tpu.memory_space<vmem>>, vector<1x1x16x4xbf16>
    %44 = vector.shape_cast %43 : vector<1x1x16x4xbf16> to vector<16x4xbf16>
    %c7 = arith.constant 7 : index
    %c0_53 = arith.constant 0 : index
    %c0_54 = arith.constant 0 : index
    %45 = vector.load %arg5[%c7, %c0_53, %c0_54] : memref<9x4x128xbf16, #tpu.memory_space<vmem>>, vector<1x4x128xbf16>
    %46 = vector.shape_cast %45 : vector<1x4x128xbf16> to vector<4x128xbf16>
    %cst_55 = arith.constant dense<0.000000e+00> : vector<16x128xf32>
    %47 = tpu.matmul %44, %46, %cst_55 {dimension_numbers = #tpu.dot_dimension_numbers<[1], [0], [0], [1], [0, 0, 1, 1], [], []>} : vector<16x4xbf16>, vector<4x128xbf16>, vector<16x128xf32> -> vector<16x128xf32>
    %48 = arith.addf %42, %47 : vector<16x128xf32>
    %c0_56 = arith.constant 0 : index
    %c0_57 = arith.constant 0 : index
    %c2_58 = arith.constant 2 : index
    %c0_59 = arith.constant 0 : index
    %49 = vector.load %arg4[%c0_56, %c0_57, %c2_58, %c0_59] : memref<1x1x18x4xbf16, #tpu.memory_space<vmem>>, vector<1x1x16x4xbf16>
    %50 = vector.shape_cast %49 : vector<1x1x16x4xbf16> to vector<16x4xbf16>
    %c8 = arith.constant 8 : index
    %c0_60 = arith.constant 0 : index
    %c0_61 = arith.constant 0 : index
    %51 = vector.load %arg5[%c8, %c0_60, %c0_61] : memref<9x4x128xbf16, #tpu.memory_space<vmem>>, vector<1x4x128xbf16>
    %52 = vector.shape_cast %51 : vector<1x4x128xbf16> to vector<4x128xbf16>
    %cst_62 = arith.constant dense<0.000000e+00> : vector<16x128xf32>
    %53 = tpu.matmul %50, %52, %cst_62 {dimension_numbers = #tpu.dot_dimension_numbers<[1], [0], [0], [1], [0, 0, 1, 1], [], []>} : vector<16x4xbf16>, vector<4x128xbf16>, vector<16x128xf32> -> vector<16x128xf32>
    %54 = arith.addf %48, %53 : vector<16x128xf32>
    %c0_63 = arith.constant 0 : index
    %c0_64 = arith.constant 0 : index
    %55 = vector.load %arg6[%c0_63, %c0_64] : memref<1x128xf32, #tpu.memory_space<vmem>>, vector<1x128xf32>
    %56 = vector.broadcast %55 : vector<1x128xf32> to vector<16x128xf32>
    %57 = arith.addf %54, %56 : vector<16x128xf32>
    %cst_65 = arith.constant 0.000000e+00 : f32
    %58 = vector.broadcast %cst_65 : f32 to vector<16x128xf32>
    %59 = arith.maximumf %57, %58 : vector<16x128xf32>
    %c0_66 = arith.constant 0 : index
    %c0_67 = arith.constant 0 : index
    %c0_68 = arith.constant 0 : index
    %c0_69 = arith.constant 0 : index
    %60 = vector.load %arg7[%c0_66, %c0_67, %c0_68, %c0_69] : memref<1x1x16x128xf32, #tpu.memory_space<vmem>>, vector<1x1x16x128xf32>
    %61 = vector.shape_cast %60 : vector<1x1x16x128xf32> to vector<16x128xf32>
    %62 = vector.shape_cast %59 : vector<16x128xf32> to vector<1x1x16x128xf32>
    tpu.vector_store %arg7[%c0_66, %c0_67, %c0_68, %c0_69], %62 {strides = array<i32>} : memref<1x1x16x128xf32, #tpu.memory_space<vmem>>, vector<1x1x16x128xf32>,
    return
  }
  func.func @transform_0(%arg0: i32, %arg1: i32) -> (i32, i32, i32, i32) {
    %c1_i32 = arith.constant 1 : i32
    %0 = arith.muli %arg1, %c1_i32 : i32
    %c0_i32 = arith.constant 0 : i32
    %1 = arith.addi %0, %c0_i32 : i32
    %c0_i32_0 = arith.constant 0 : i32
    %c0_i32_1 = arith.constant 0 : i32
    %c0_i32_2 = arith.constant 0 : i32
    return %arg0, %1, %c0_i32_0, %c0_i32_1 : i32, i32, i32, i32
  }
  func.func @transform_1(%arg0: i32, %arg1: i32) -> (i32, i32, i32, i32) {
    %c1_i32 = arith.constant 1 : i32
    %0 = arith.muli %arg1, %c1_i32 : i32
    %c1_i32_0 = arith.constant 1 : i32
    %1 = arith.addi %0, %c1_i32_0 : i32
    %c0_i32 = arith.constant 0 : i32
    %c0_i32_1 = arith.constant 0 : i32
    %c0_i32_2 = arith.constant 0 : i32
    return %arg0, %1, %c0_i32, %c0_i32_1 : i32, i32, i32, i32
  }
  func.func @transform_2(%arg0: i32, %arg1: i32) -> (i32, i32, i32, i32) {
    %c1_i32 = arith.constant 1 : i32
    %0 = arith.muli %arg1, %c1_i32 : i32
    %c2_i32 = arith.constant 2 : i32
    %1 = arith.addi %0, %c2_i32 : i32
    %c0_i32 = arith.constant 0 : i32
    %c0_i32_0 = arith.constant 0 : i32
    %c0_i32_1 = arith.constant 0 : i32
    return %arg0, %1, %c0_i32, %c0_i32_0 : i32, i32, i32, i32
  }
  func.func @transform_3(%arg0: i32, %arg1: i32) -> (i32, i32, i32) {
    %c0_i32 = arith.constant 0 : i32
    %c0_i32_0 = arith.constant 0 : i32
    %c0_i32_1 = arith.constant 0 : i32
    %c0_i32_2 = arith.constant 0 : i32
    return %c0_i32, %c0_i32_0, %c0_i32_1 : i32, i32, i32
  }
  func.func @transform_4(%arg0: i32, %arg1: i32) -> (i32, i32) {
    %c0_i32 = arith.constant 0 : i32
    %c0_i32_0 = arith.constant 0 : i32
    %c0_i32_1 = arith.constant 0 : i32
    return %c0_i32, %c0_i32_0 : i32, i32
  }
  func.func @transform_5(%arg0: i32, %arg1: i32) -> (i32, i32, i32, i32) {
    %c0_i32 = arith.constant 0 : i32
    %c0_i32_0 = arith.constant 0 : i32
    %c0_i32_1 = arith.constant 0 : i32
    return %arg0, %arg1, %c0_i32, %c0_i32_0 : i32, i32, i32, i32
  }
}

</mosaic_0001>

<llo_original>
// kernel: conv_layer_forward.1
$region0: #{conv_layer_forward.1}
  #allocation0 [shape = 'u32[]', space=smem, size = 0x4, offset = 0x4, fixed_abs, tag = 'smem constant byte address 0x4 - core index']
  #allocation1 [shape = 'u32[144,128]{1,0:T(1,128)}', space=vmem, size = 0x12000, scoped, tag = 'internal scratch']
  %s0 = inlined_call_operand.vmem [shape: bf16[2,18,18,4], index: 0, kind: input, shape index: {}, may-alias: {0,1,2}]
  %s1 = inlined_call_operand.vmem [shape: bf16[2,18,18,4], index: 1, kind: input, shape index: {}, may-alias: {0,1,2}]
  %s2 = inlined_call_operand.vmem [shape: bf16[2,18,18,4], index: 2, kind: input, shape index: {}, may-alias: {0,1,2}]
  %s3 = inlined_call_operand.vmem [shape: bf16[9,4,128], index: 3, kind: input, shape index: {}]
  %s4 = inlined_call_operand.vmem [shape: f32[1,128], index: 4, kind: input, shape index: {}]
  %s5 = inlined_call_operand.vmem [shape: f32[2,16,16,128], index: 5, kind: output, shape index: {}]
  %s6 = sld [smem:[#allocation0]]
  $region53: #{conv_layer_forward.1} parent=0
    _
  %s8 = ssub.s32 1, %s6
  %s9 = scalar_select 0, %s8, %s6
  loop: start=0, step=1, limit=34
  $region2: #{conv_layer_forward.1} parent=0 // loop_pre_header
    _
  $region3: #{conv_layer_forward.1} parent=0 // loop_header
    %s11 = sphi 0, %s15
    %p12 = scmp.ge.s32.totalorder %s11, 34
    %s18 = sphi 0, %s30
    %s19 = sphi 0, %s26
    %s20 = sphi 0, %s18
    %s21 = sphi 0, %s19
    %s22 = sphi 0, %s20
    %s23 = sphi 0, %s21
    %s35 = sphi 0, %s37
    %s38 = sphi 0, %s35
    %s39 = sphi 0, %s38
    %s55 = sphi 0, %s39
    %s65 = sphi 0, %s67
    %s68 = sphi 0, %s65
    %s69 = sphi 0, %s68
    %s85 = sphi 0, %s69
    %s95 = sphi 0, %s97
    %s98 = sphi 0, %s95
    %s99 = sphi 0, %s98
    %s115 = sphi 0, %s99
    %s119 = sphi 0, %s119
    %s121 = sphi 0, %s119
    %s122 = sphi 0, %s121
    %s136 = sphi 0, %s122
    %s140 = sphi 0, %s140
    %s142 = sphi 0, %s140
    %s143 = sphi 0, %s142
    %s157 = sphi 0, %s143
    %s165 = sphi 0, %s167
    %s168 = sphi 0, %s165
    %s169 = sphi 0, %s168
    %s185 = sphi 0, %s169
  $region4: #{conv_layer_forward.1} parent=0 // loop_header_branch
    %14 = sbr.rel (%p12) target = $region8
  $region5: #{conv_layer_forward.1} parent=0 // loop_body
    %s16 = ssub.s32 %s11, 1
    %s17 = ssub.s32 %s11, 2
    %s24 = sadd.s32 1, %s19
    %p25 = scmp.ge.s32.totalorder %s24, 16
    %s26 = scalar_select %p25, 0, %s24
    %s27 = sadd.s32 1, %s18
    %s28 = scalar_select %p25, %s27, %s18
    %p29 = scmp.ge.s32.totalorder %s28, 2
    %s30 = scalar_select %p29, 0, %s28
    %s31 = ssub.s32 %s18, %s30
    %s32 = ssub.s32 %s19, %s26
    %s33 = sor.u32 %s31, %s32
    %p34 = scmp.eq.s32.totalorder %s33, 0
    %s36 = sadd.s32 %s35, 1
    %s37 = scalar_select %p34, %s35, %s36
    %p40 = pneg %p34
    %p41 = scmp.eq.s32.totalorder %s11, 31
    %p42 = por %p40, %p41
    %p43 = scmp.ne.s32.totalorder %s35, %s38
    %p44 = scmp.eq.s32.totalorder %s11, 0
    %p45 = por %p43, %p44
    %p46 = scmp.ne.s32.totalorder %s35, %s38
    %p47 = scmp.eq.s32.totalorder %s16, 31
    %p48 = por %p46, %p47
    %p49 = scmp.ne.s32.totalorder %s38, %s39
    %p50 = scmp.eq.s32.totalorder %s16, 0
    %p51 = por %p49, %p50
    %p52 = scmp.ne.s32.totalorder %s38, %s39
    %p53 = scmp.eq.s32.totalorder %s17, 31
    %p54 = por %p52, %p53
    %p56 = scmp.ne.s32.totalorder %s39, %s55
    %p57 = scmp.eq.s32.totalorder %s17, 0
    %p58 = por %p56, %p57
    %s59 = sadd.s32 %s19, 1
    %s60 = sadd.s32 %s26, 1
    %s61 = ssub.s32 %s18, %s30
    %s62 = ssub.s32 %s59, %s60
    %s63 = sor.u32 %s61, %s62
    %p64 = scmp.eq.s32.totalorder %s63, 0
    %s66 = sadd.s32 %s65, 1
    %s67 = scalar_select %p64, %s65, %s66
    %p70 = pneg %p64
    %p71 = scmp.eq.s32.totalorder %s11, 31
    %p72 = por %p70, %p71
    %p73 = scmp.ne.s32.totalorder %s65, %s68
    %p74 = scmp.eq.s32.totalorder %s11, 0
    %p75 = por %p73, %p74
    %p76 = scmp.ne.s32.totalorder %s65, %s68
    %p77 = scmp.eq.s32.totalorder %s16, 31
    %p78 = por %p76, %p77
    %p79 = scmp.ne.s32.totalorder %s68, %s69
    %p80 = scmp.eq.s32.totalorder %s16, 0
    %p81 = por %p79, %p80
    %p82 = scmp.ne.s32.totalorder %s68, %s69
    %p83 = scmp.eq.s32.totalorder %s17, 31
    %p84 = por %p82, %p83
    %p86 = scmp.ne.s32.totalorder %s69, %s85
    %p87 = scmp.eq.s32.totalorder %s17, 0
    %p88 = por %p86, %p87
    %s89 = sadd.s32 %s19, 2
    %s90 = sadd.s32 %s26, 2
    %s91 = ssub.s32 %s18, %s30
    %s92 = ssub.s32 %s89, %s90
    %s93 = sor.u32 %s91, %s92
    %p94 = scmp.eq.s32.totalorder %s93, 0
    %s96 = sadd.s32 %s95, 1
    %s97 = scalar_select %p94, %s95, %s96
    %p100 = pneg %p94
    %p101 = scmp.eq.s32.totalorder %s11, 31
    %p102 = por %p100, %p101
    %p103 = scmp.ne.s32.totalorder %s95, %s98
    %p104 = scmp.eq.s32.totalorder %s11, 0
    %p105 = por %p103, %p104
    %p106 = scmp.ne.s32.totalorder %s95, %s98
    %p107 = scmp.eq.s32.totalorder %s16, 31
    %p108 = por %p106, %p107
    %p109 = scmp.ne.s32.totalorder %s98, %s99
    %p110 = scmp.eq.s32.totalorder %s16, 0
    %p111 = por %p109, %p110
    %p112 = scmp.ne.s32.totalorder %s98, %s99
    %p113 = scmp.eq.s32.totalorder %s17, 31
    %p114 = por %p112, %p113
    %p116 = scmp.ne.s32.totalorder %s99, %s115
    %p117 = scmp.eq.s32.totalorder %s17, 0
    %p118 = por %p116, %p117
    %s120 = sadd.s32 %s119, 1
    %p123 = scmp.eq.s32.totalorder %s11, 31
    %p124 = scmp.ne.s32.totalorder %s119, %s121
    %p125 = scmp.eq.s32.totalorder %s11, 0
    %p126 = por %p124, %p125
    %p127 = scmp.ne.s32.totalorder %s119, %s121
    %p128 = scmp.eq.s32.totalorder %s16, 31
    %p129 = por %p127, %p128
    %p130 = scmp.ne.s32.totalorder %s121, %s122
    %p131 = scmp.eq.s32.totalorder %s16, 0
    %p132 = por %p130, %p131
    %p133 = scmp.ne.s32.totalorder %s121, %s122
    %p134 = scmp.eq.s32.totalorder %s17, 31
    %p135 = por %p133, %p134
    %p137 = scmp.ne.s32.totalorder %s122, %s136
    %p138 = scmp.eq.s32.totalorder %s17, 0
    %p139 = por %p137, %p138
    %s141 = sadd.s32 %s140, 1
    %p144 = scmp.eq.s32.totalorder %s11, 31
    %p145 = scmp.ne.s32.totalorder %s140, %s142
    %p146 = scmp.eq.s32.totalorder %s11, 0
    %p147 = por %p145, %p146
    %p148 = scmp.ne.s32.totalorder %s140, %s142
    %p149 = scmp.eq.s32.totalorder %s16, 31
    %p150 = por %p148, %p149
    %p151 = scmp.ne.s32.totalorder %s142, %s143
    %p152 = scmp.eq.s32.totalorder %s16, 0
    %p153 = por %p151, %p152
    %p154 = scmp.ne.s32.totalorder %s142, %s143
    %p155 = scmp.eq.s32.totalorder %s17, 31
    %p156 = por %p154, %p155
    %p158 = scmp.ne.s32.totalorder %s143, %s157
    %p159 = scmp.eq.s32.totalorder %s17, 0
    %p160 = por %p158, %p159
    %s161 = ssub.s32 %s18, %s30
    %s162 = ssub.s32 %s19, %s26
    %s163 = sor.u32 %s161, %s162
    %p164 = scmp.eq.s32.totalorder %s163, 0
    %s166 = sadd.s32 %s165, 1
    %s167 = scalar_select %p164, %s165, %s166
    %p170 = pneg %p164
    %p171 = scmp.eq.s32.totalorder %s11, 31
    %p172 = por %p170, %p171
    %p173 = scmp.ne.s32.totalorder %s165, %s168
    %p174 = scmp.eq.s32.totalorder %s11, 0
    %p175 = por %p173, %p174
    %p176 = scmp.ne.s32.totalorder %s165, %s168
    %p177 = scmp.eq.s32.totalorder %s16, 31
    %p178 = por %p176, %p177
    %p179 = scmp.ne.s32.totalorder %s168, %s169
    %p180 = scmp.eq.s32.totalorder %s16, 0
    %p181 = por %p179, %p180
    %p182 = scmp.ne.s32.totalorder %s168, %s169
    %p183 = scmp.eq.s32.totalorder %s17, 31
    %p184 = por %p182, %p183
    %p186 = scmp.ne.s32.totalorder %s169, %s185
    %p187 = scmp.eq.s32.totalorder %s17, 0
    %p188 = por %p186, %p187
    %p189 = scmp.le.s32.totalorder 1, %s11
    %p190 = scmp.lt.s32.totalorder %s11, 33
    %p191 = pnand %p189, %p190
    %p192 = pneg %p191
    // Predicated region
    $region9: #{conv_layer_forward.1} parent=5 // pred_check
      _
    $region10: #{conv_layer_forward.1} parent=5 // pred_check_branch
      %194 = sbr.rel (%p191) target = $region12
    $region11: #{conv_layer_forward.1} parent=5 // pred_region
      %s195 = ssub.s32 %s11, 1
      // Predicated region
      $region13: #{conv_layer_forward.1} parent=11 // pred_check
        %p196 = pneg %p132
      $region14: #{conv_layer_forward.1} parent=11 // pred_check_branch
        %198 = sbr.rel (%p196) target = $region16
      $region15: #{conv_layer_forward.1} parent=11 // pred_region
        _
      $region16: #{conv_layer_forward.1} parent=11 // pred_fallthru
        _
      // Predicated region
      $region17: #{conv_layer_forward.1} parent=11 // pred_check
        %p199 = pneg %p153
      $region18: #{conv_layer_forward.1} parent=11 // pred_check_branch
        %201 = sbr.rel (%p199) target = $region20
      $region19: #{conv_layer_forward.1} parent=11 // pred_region
        _
      $region20: #{conv_layer_forward.1} parent=11 // pred_fallthru
        _
    $region12: #{conv_layer_forward.1} parent=5 // pred_fallthru
      _
    %p202 = scmp.lt.s32.totalorder %s11, 32
    // Predicated region
    $region21: #{conv_layer_forward.1} parent=5 // pred_check
      %p203 = pneg %p202
    $region22: #{conv_layer_forward.1} parent=5 // pred_check_branch
      %205 = sbr.rel (%p203) target = $region24
    $region23: #{conv_layer_forward.1} parent=5 // pred_region
      // Predicated region
      $region25: #{conv_layer_forward.1} parent=23 // pred_check
        %p206 = pneg %p45
      $region26: #{conv_layer_forward.1} parent=23 // pred_check_branch
        %208 = sbr.rel (%p206) target = $region28
      $region27: #{conv_layer_forward.1} parent=23 // pred_region
        %p209 = scmp.lt.s32.totalorder %s18, 1
        %s210 = scalar_select %p209, %s18, 1
        %p211 = scmp.lt.s32.totalorder %s19, 17
        %s212 = scalar_select %p211, %s19, 17
        %s213 = smul.addr %s212, 3
        %s214 = smul.addr %s210, 54
        %s215 = sadd.s32 %s213, %s214
        %s216 = smul.addr %s215, 4
        %s217 = scalar_lea.vmem %s0, %s216
      $region28: #{conv_layer_forward.1} parent=23 // pred_fallthru
        _
      // Predicated region
      $region29: #{conv_layer_forward.1} parent=23 // pred_check
        %p218 = pneg %p75
      $region30: #{conv_layer_forward.1} parent=23 // pred_check_branch
        %220 = sbr.rel (%p218) target = $region32
      $region31: #{conv_layer_forward.1} parent=23 // pred_region
        %s221 = sadd.s32 %s19, 1
        %p222 = scmp.lt.s32.totalorder %s18, 1
        %s223 = scalar_select %p222, %s18, 1
        %p224 = scmp.lt.s32.totalorder %s221, 17
        %s225 = scalar_select %p224, %s221, 17
        %s226 = smul.addr %s225, 3
        %s227 = smul.addr %s223, 54
        %s228 = sadd.s32 %s226, %s227
        %s229 = smul.addr %s228, 4
        %s230 = scalar_lea.vmem %s1, %s229
        %s231 = sadd.s32 %s19, 1
      $region32: #{conv_layer_forward.1} parent=23 // pred_fallthru
        _
      // Predicated region
      $region33: #{conv_layer_forward.1} parent=23 // pred_check
        %p232 = pneg %p105
      $region34: #{conv_layer_forward.1} parent=23 // pred_check_branch
        %234 = sbr.rel (%p232) target = $region36
      $region35: #{conv_layer_forward.1} parent=23 // pred_region
        %s235 = sadd.s32 %s19, 2
        %p236 = scmp.lt.s32.totalorder %s18, 1
        %s237 = scalar_select %p236, %s18, 1
        %p238 = scmp.lt.s32.totalorder %s235, 17
        %s239 = scalar_select %p238, %s235, 17
        %s240 = smul.addr %s239, 3
        %s241 = smul.addr %s237, 54
        %s242 = sadd.s32 %s240, %s241
        %s243 = smul.addr %s242, 4
        %s244 = scalar_lea.vmem %s2, %s243
        %s245 = sadd.s32 %s19, 2
      $region36: #{conv_layer_forward.1} parent=23 // pred_fallthru
        _
    $region24: #{conv_layer_forward.1} parent=5 // pred_fallthru
      _
    %p246 = scmp.le.s32.totalorder 1, %s11
    %p247 = scmp.lt.s32.totalorder %s11, 33
    %p248 = pnand %p246, %p247
    %p249 = pneg %p248
    // Predicated region
    $region37: #{conv_layer_forward.1} parent=5 // pred_check
      _
    $region38: #{conv_layer_forward.1} parent=5 // pred_check_branch
      %251 = sbr.rel (%p248) target = $region40
    $region39: #{conv_layer_forward.1} parent=5 // pred_region
      %s252 = ssub.s32 %s11, 1
      %p253 = scmp.lt.s32.totalorder %s20, 1
      %s254 = scalar_select %p253, %s20, 1
      %p255 = scmp.lt.s32.totalorder %s21, 17
      %s256 = scalar_select %p255, %s21, 17
      %s257 = smul.addr %s256, 3
      %s258 = smul.addr %s254, 54
      %s259 = sadd.s32 %s257, %s258
      %s260 = smul.addr %s259, 4
      %s261 = scalar_lea.vmem %s0, %s260
      %p262 = pneg %p51
      %p263 = pneg %p48
      %s264 = sadd.s32 %s21, 1
      %p265 = scmp.lt.s32.totalorder %s20, 1
      %s266 = scalar_select %p265, %s20, 1
      %p267 = scmp.lt.s32.totalorder %s264, 17
      %s268 = scalar_select %p267, %s264, 17
      %s269 = smul.addr %s268, 3
      %s270 = smul.addr %s266, 54
      %s271 = sadd.s32 %s269, %s270
      %s272 = smul.addr %s271, 4
      %s273 = scalar_lea.vmem %s1, %s272
      %p274 = pneg %p81
      %p275 = pneg %p78
      %s276 = sadd.s32 %s21, 2
      %p277 = scmp.lt.s32.totalorder %s20, 1
      %s278 = scalar_select %p277, %s20, 1
      %p279 = scmp.lt.s32.totalorder %s276, 17
      %s280 = scalar_select %p279, %s276, 17
      %s281 = smul.addr %s280, 3
      %s282 = smul.addr %s278, 54
      %s283 = sadd.s32 %s281, %s282
      %s284 = smul.addr %s283, 4
      %s285 = scalar_lea.vmem %s2, %s284
      %p286 = pneg %p111
      %p287 = pneg %p108
      %p288 = pneg %p132
      %p289 = pneg %p129
      %p290 = pneg %p153
      %p291 = pneg %p150
      %p292 = pneg %p181
      %p293 = pneg %p178
      %p294 = scmp.lt.s32.totalorder %s20, 1
      %s295 = scalar_select %p294, %s20, 1
      %p296 = scmp.lt.s32.totalorder %s21, 15
      %s297 = scalar_select %p296, %s21, 15
      %s298 = smul.addr %s297, 2
      %s299 = smul.addr %s295, 32
      %s300 = sadd.s32 %s298, %s299
      %s301 = smul.addr %s300, 8
      %s302 = scalar_lea.vmem %s5, %s301
      %p303 = scmp.lt.s32.totalorder %s20, 1
      %s304 = scalar_select %p303, %s20, 1
      %p305 = scmp.lt.s32.totalorder %s21, 17
      %s306 = scalar_select %p305, %s21, 17
      %s307 = smul.addr %s306, 3
      %s308 = smul.addr %s304, 54
      %s309 = sadd.s32 %s307, %s308
      %s310 = smul.addr %s309, 4
      %s311 = scalar_lea.vmem %s0, %s310
      %s312 = sadd.s32 %s21, 1
      %p313 = scmp.lt.s32.totalorder %s20, 1
      %s314 = scalar_select %p313, %s20, 1
      %p315 = scmp.lt.s32.totalorder %s312, 17
      %s316 = scalar_select %p315, %s312, 17
      %s317 = smul.addr %s316, 3
      %s318 = smul.addr %s314, 54
      %s319 = sadd.s32 %s317, %s318
      %s320 = smul.addr %s319, 4
      %s321 = scalar_lea.vmem %s1, %s320
      %s322 = sadd.s32 %s21, 1
      %s323 = sadd.s32 %s21, 2
      %p324 = scmp.lt.s32.totalorder %s20, 1
      %s325 = scalar_select %p324, %s20, 1
      %p326 = scmp.lt.s32.totalorder %s323, 17
      %s327 = scalar_select %p326, %s323, 17
      %s328 = smul.addr %s327, 3
      %s329 = smul.addr %s325, 54
      %s330 = sadd.s32 %s328, %s329
      %s331 = smul.addr %s330, 4
      %s332 = scalar_lea.vmem %s2, %s331
      %s333 = sadd.s32 %s21, 2
      %p334 = scmp.lt.s32.totalorder %s20, 1
      %s335 = scalar_select %p334, %s20, 1
      %p336 = scmp.lt.s32.totalorder %s21, 15
      %s337 = scalar_select %p336, %s21, 15
      %s338 = smul.addr %s337, 2
      %s339 = smul.addr %s335, 32
      %s340 = sadd.s32 %s338, %s339
      %s341 = smul.addr %s340, 8
      %s342 = scalar_lea.vmem %s5, %s341
      %v344 = vld [vmem:[%s311] sm:$0xf]
      %v345 = vld [vmem:[%s311 + $0x4] sm:$0xf]
      %v346 = vld [vmem:[%s3] sm:$0x3]
      %v347 = vld [vmem:[%s311 + $0x8] sm:$0x1]
      %s348 = scalar_lea.vmem %s3, 2
      %v349 = vld [vmem:[%s348] sm:$0x3]
      %v353 = vunpack.c.l.b16 %v344
      %v354 = vunpack.c.l.b16 %v345
      %v355 = vunpack.c.l.b16 %v347
      %v356 = vpack.c.b16 %v354, %v353
      %v357 = vpack.c.b16 %v355, %v355
      %vm358 = vsmask.f32 7424
      %v360 = vshrl.u32 %v356, 16
      %v362 = vshll.u32 %v356, 16
      %v364 = vrot.slane %v362, 1
      %v365 = vor.u32 %v360, %v364
      %v367 = vshll.u32 %v357, 16
      %v369 = vrot.slane %v367, 1
      %v370 = vsel %vm358, %v365, %v369
      %vm371 = vcmask 31744
      %v373 = vsel %vm371, %v370, 0
      %vm375 = vcmask 1041408
      %v377 = vsel %vm375, %v349, 0
      %379 = vmatprep.subr.bf16.mxu0 0
      %380 = vmatpush1.bf16.msra.mxu0 0
      %381 = vmatprep.subr.bf16.mxu0 0
      %382 = vmatpush1.bf16.msra.mxu0 0
      %383 = vmatprep.subr.bf16.mxu0 0
      %384 = vmatpush1.bf16.msra.mxu0 0
      %385 = vmatprep.subr.bf16.mxu0 0
      %386 = vmatpush1.bf16.msra.mxu0 0
      %387 = vmatprep.subr.bf16.mxu0 0
      %388 = vmatpush1.bf16.msra.mxu0 0
      %389 = vmatprep.subr.bf16.mxu0 0
      %390 = vmatpush1.bf16.msra.mxu0 0
      %391 = vmatprep.subr.bf16.mxu0 0
      %392 = vmatpush1.bf16.msra.mxu0 0
      %393 = vmatprep.subr.bf16.mxu0 0
      %394 = vmatpush1.bf16.msra.mxu0 %v377
      %395 = vmatprep.subr.bf16.mxu0 0
      %396 = vmatpush2.bf16.msra.mxu0 0
      %397 = vmatprep.subr.bf16.mxu0 0
      %398 = vmatpush2.bf16.msra.mxu0 0
      %399 = vmatprep.subr.bf16.mxu0 0
      %400 = vmatpush2.bf16.msra.mxu0 0
      %401 = vmatprep.subr.bf16.mxu0 0
      %402 = vmatpush2.bf16.msra.mxu0 0
      %403 = vmatprep.subr.bf16.mxu0 0
      %404 = vmatpush2.bf16.msra.mxu0 0
      %405 = vmatprep.subr.bf16.mxu0 0
      %406 = vmatpush2.bf16.msra.mxu0 0
      %407 = vmatprep.subr.bf16.mxu0 0
      %408 = vmatpush2.bf16.msra.mxu0 0
      %409 = vmatprep.subr.bf16.mxu0 0
      %410 = vmatpush2.bf16.msra.mxu0 0
      %411 = vmatprep.mubr.bf16.mxu0 0
      %412 = vmatmul.mubr.bf16.gmra.mxu0 %v373
      %v413 = vpop.f32.mrf.mxu0
      %v414 = vadd.f32 0.0, %v413
      %v415 = vpop.f32.mrf.mxu0
      %v416 = vpop.f32.mrf.mxu0
      %v417 = vadd.f32 0.0, %v416
      %v418 = vpop.f32.mrf.mxu0
      %419 = vdwg.mxu0
      %v420 = vsel %vm371, %v356, 0
      %v423 = vsel %vm375, %v346, 0
      %425 = vmatprep.subr.bf16.mxu0 0
      %426 = vmatpush1.bf16.msra.mxu0 0
      %427 = vmatprep.subr.bf16.mxu0 0
      %428 = vmatpush1.bf16.msra.mxu0 0
      %429 = vmatprep.subr.bf16.mxu0 0
      %430 = vmatpush1.bf16.msra.mxu0 0
      %431 = vmatprep.subr.bf16.mxu0 0
      %432 = vmatpush1.bf16.msra.mxu0 0
      %433 = vmatprep.subr.bf16.mxu0 0
      %434 = vmatpush1.bf16.msra.mxu0 0
      %435 = vmatprep.subr.bf16.mxu0 0
      %436 = vmatpush1.bf16.msra.mxu0 0
      %437 = vmatprep.subr.bf16.mxu0 0
      %438 = vmatpush1.bf16.msra.mxu0 0
      %439 = vmatprep.subr.bf16.mxu0 0
      %440 = vmatpush1.bf16.msra.mxu0 %v423
      %441 = vmatprep.subr.bf16.mxu0 0
      %442 = vmatpush2.bf16.msra.mxu0 0
      %443 = vmatprep.subr.bf16.mxu0 0
      %444 = vmatpush2.bf16.msra.mxu0 0
      %445 = vmatprep.subr.bf16.mxu0 0
      %446 = vmatpush2.bf16.msra.mxu0 0
      %447 = vmatprep.subr.bf16.mxu0 0
      %448 = vmatpush2.bf16.msra.mxu0 0
      %449 = vmatprep.subr.bf16.mxu0 0
      %450 = vmatpush2.bf16.msra.mxu0 0
      %451 = vmatprep.subr.bf16.mxu0 0
      %452 = vmatpush2.bf16.msra.mxu0 0
      %453 = vmatprep.subr.bf16.mxu0 0
      %454 = vmatpush2.bf16.msra.mxu0 0
      %455 = vmatprep.subr.bf16.mxu0 0
      %456 = vmatpush2.bf16.msra.mxu0 0
      %457 = vmatprep.mubr.bf16.mxu0 0
      %458 = vmatmul.mubr.bf16.gmra.mxu0 %v420
      %v459 = vpop.f32.mrf.mxu0
      %v460 = vadd.f32 %v414, %v459
      %v461 = vpop.f32.mrf.mxu0
      %v462 = vpop.f32.mrf.mxu0
      %v463 = vadd.f32 %v417, %v462
      %v464 = vpop.f32.mrf.mxu0
      %465 = vdwg.mxu0
      %v466 = vld [vmem:[%s311] sm:$0xe]
      %s467 = scalar_lea.vmem %s3, 4
      %v468 = vld [vmem:[%s467] sm:$0x3]
      %v470 = vunpack.c.l.b16 %v466
      %v471 = vpack.c.b16 %v354, %v470
      %vm472 = vcmask 1046528
      %v473 = vrot.slane %v471, 1
      %v474 = vrot.slane %v357, 1
      %v475 = vsel %vm472, %v473, %v474
      %v477 = vsel %vm371, %v475, 0
      %v480 = vsel %vm375, %v468, 0
      %482 = vmatprep.subr.bf16.mxu0 0
      %483 = vmatpush1.bf16.msra.mxu0 0
      %484 = vmatprep.subr.bf16.mxu0 0
      %485 = vmatpush1.bf16.msra.mxu0 0
      %486 = vmatprep.subr.bf16.mxu0 0
      %487 = vmatpush1.bf16.msra.mxu0 0
      %488 = vmatprep.subr.bf16.mxu0 0
      %489 = vmatpush1.bf16.msra.mxu0 0
      %490 = vmatprep.subr.bf16.mxu0 0
      %491 = vmatpush1.bf16.msra.mxu0 0
      %492 = vmatprep.subr.bf16.mxu0 0
      %493 = vmatpush1.bf16.msra.mxu0 0
      %494 = vmatprep.subr.bf16.mxu0 0
      %495 = vmatpush1.bf16.msra.mxu0 0
      %496 = vmatprep.subr.bf16.mxu0 0
      %497 = vmatpush1.bf16.msra.mxu0 %v480
      %498 = vmatprep.subr.bf16.mxu0 0
      %499 = vmatpush2.bf16.msra.mxu0 0
      %500 = vmatprep.subr.bf16.mxu0 0
      %501 = vmatpush2.bf16.msra.mxu0 0
      %502 = vmatprep.subr.bf16.mxu0 0
      %503 = vmatpush2.bf16.msra.mxu0 0
      %504 = vmatprep.subr.bf16.mxu0 0
      %505 = vmatpush2.bf16.msra.mxu0 0
      %506 = vmatprep.subr.bf16.mxu0 0
      %507 = vmatpush2.bf16.msra.mxu0 0
      %508 = vmatprep.subr.bf16.mxu0 0
      %509 = vmatpush2.bf16.msra.mxu0 0
      %510 = vmatprep.subr.bf16.mxu0 0
      %511 = vmatpush2.bf16.msra.mxu0 0
      %512 = vmatprep.subr.bf16.mxu0 0
      %513 = vmatpush2.bf16.msra.mxu0 0
      %514 = vmatprep.mubr.bf16.mxu0 0
      %515 = vmatmul.mubr.bf16.gmra.mxu0 %v477
      %v516 = vpop.f32.mrf.mxu0
      %v517 = vadd.f32 0.0, %v516
      %v518 = vpop.f32.mrf.mxu0
      %v519 = vpop.f32.mrf.mxu0
      %v520 = vadd.f32 0.0, %v519
      %v521 = vpop.f32.mrf.mxu0
      %522 = vdwg.mxu0
      %v523 = vadd.f32 %v460, %v517
      %v524 = vadd.f32 %v463, %v520
      %v525 = vld [vmem:[%s321] sm:$0xf]
      %v526 = vld [vmem:[%s321 + $0x4] sm:$0xf]
      %s527 = scalar_lea.vmem %s3, 6
      %v528 = vld [vmem:[%s527] sm:$0x3]
      %v531 = vunpack.c.l.b16 %v525
      %v532 = vunpack.c.l.b16 %v526
      %v533 = vpack.c.b16 %v532, %v531
      %v535 = vsel %vm371, %v533, 0
      %v538 = vsel %vm375, %v528, 0
      %540 = vmatprep.subr.bf16.mxu0 0
      %541 = vmatpush1.bf16.msra.mxu0 0
      %542 = vmatprep.subr.bf16.mxu0 0
      %543 = vmatpush1.bf16.msra.mxu0 0
      %544 = vmatprep.subr.bf16.mxu0 0
      %545 = vmatpush1.bf16.msra.mxu0 0
      %546 = vmatprep.subr.bf16.mxu0 0
      %547 = vmatpush1.bf16.msra.mxu0 0
      %548 = vmatprep.subr.bf16.mxu0 0
      %549 = vmatpush1.bf16.msra.mxu0 0
      %550 = vmatprep.subr.bf16.mxu0 0
      %551 = vmatpush1.bf16.msra.mxu0 0
      %552 = vmatprep.subr.bf16.mxu0 0
      %553 = vmatpush1.bf16.msra.mxu0 0
      %554 = vmatprep.subr.bf16.mxu0 0
      %555 = vmatpush1.bf16.msra.mxu0 %v538
      %556 = vmatprep.subr.bf16.mxu0 0
      %557 = vmatpush2.bf16.msra.mxu0 0
      %558 = vmatprep.subr.bf16.mxu0 0
      %559 = vmatpush2.bf16.msra.mxu0 0
      %560 = vmatprep.subr.bf16.mxu0 0
      %561 = vmatpush2.bf16.msra.mxu0 0
      %562 = vmatprep.subr.bf16.mxu0 0
      %563 = vmatpush2.bf16.msra.mxu0 0
      %564 = vmatprep.subr.bf16.mxu0 0
      %565 = vmatpush2.bf16.msra.mxu0 0
      %566 = vmatprep.subr.bf16.mxu0 0
      %567 = vmatpush2.bf16.msra.mxu0 0
      %568 = vmatprep.subr.bf16.mxu0 0
      %569 = vmatpush2.bf16.msra.mxu0 0
      %570 = vmatprep.subr.bf16.mxu0 0
      %571 = vmatpush2.bf16.msra.mxu0 0
      %572 = vmatprep.mubr.bf16.mxu0 0
      %573 = vmatmul.mubr.bf16.gmra.mxu0 %v535
      %v574 = vpop.f32.mrf.mxu0
      %v575 = vadd.f32 0.0, %v574
      %v576 = vpop.f32.mrf.mxu0
      %v577 = vpop.f32.mrf.mxu0
      %v578 = vadd.f32 0.0, %v577
      %v579 = vpop.f32.mrf.mxu0
      %580 = vdwg.mxu0
      %v581 = vadd.f32 %v523, %v575
      %v582 = vadd.f32 %v524, %v578
      %v583 = vld [vmem:[%s321] sm:$0xf]
      %v584 = vld [vmem:[%s321 + $0x4] sm:$0xf]
      %v585 = vld [vmem:[%s321 + $0x8] sm:$0x1]
      %s586 = scalar_lea.vmem %s3, 8
      %v587 = vld [vmem:[%s586] sm:$0x3]
      %v591 = vunpack.c.l.b16 %v583
      %v592 = vunpack.c.l.b16 %v584
      %v593 = vunpack.c.l.b16 %v585
      %v594 = vpack.c.b16 %v592, %v591
      %v595 = vpack.c.b16 %v593, %v593
      %v597 = vshrl.u32 %v594, 16
      %v599 = vshll.u32 %v594, 16
      %v601 = vrot.slane %v599, 1
      %v602 = vor.u32 %v597, %v601
      %v604 = vshll.u32 %v595, 16
      %v606 = vrot.slane %v604, 1
      %v607 = vsel %vm358, %v602, %v606
      %v609 = vsel %vm371, %v607, 0
      %v612 = vsel %vm375, %v587, 0
      %614 = vmatprep.subr.bf16.mxu0 0
      %615 = vmatpush1.bf16.msra.mxu0 0
      %616 = vmatprep.subr.bf16.mxu0 0
      %617 = vmatpush1.bf16.msra.mxu0 0
      %618 = vmatprep.subr.bf16.mxu0 0
      %619 = vmatpush1.bf16.msra.mxu0 0
      %620 = vmatprep.subr.bf16.mxu0 0
      %621 = vmatpush1.bf16.msra.mxu0 0
      %622 = vmatprep.subr.bf16.mxu0 0
      %623 = vmatpush1.bf16.msra.mxu0 0
      %624 = vmatprep.subr.bf16.mxu0 0
      %625 = vmatpush1.bf16.msra.mxu0 0
      %626 = vmatprep.subr.bf16.mxu0 0
      %627 = vmatpush1.bf16.msra.mxu0 0
      %628 = vmatprep.subr.bf16.mxu0 0
      %629 = vmatpush1.bf16.msra.mxu0 %v612
      %630 = vmatprep.subr.bf16.mxu0 0
      %631 = vmatpush2.bf16.msra.mxu0 0
      %632 = vmatprep.subr.bf16.mxu0 0
      %633 = vmatpush2.bf16.msra.mxu0 0
      %634 = vmatprep.subr.bf16.mxu0 0
      %635 = vmatpush2.bf16.msra.mxu0 0
      %636 = vmatprep.subr.bf16.mxu0 0
      %637 = vmatpush2.bf16.msra.mxu0 0
      %638 = vmatprep.subr.bf16.mxu0 0
      %639 = vmatpush2.bf16.msra.mxu0 0
      %640 = vmatprep.subr.bf16.mxu0 0
      %641 = vmatpush2.bf16.msra.mxu0 0
      %642 = vmatprep.subr.bf16.mxu0 0
      %643 = vmatpush2.bf16.msra.mxu0 0
      %644 = vmatprep.subr.bf16.mxu0 0
      %645 = vmatpush2.bf16.msra.mxu0 0
      %646 = vmatprep.mubr.bf16.mxu0 0
      %647 = vmatmul.mubr.bf16.gmra.mxu0 %v609
      %v648 = vpop.f32.mrf.mxu0
      %v649 = vadd.f32 0.0, %v648
      %v650 = vpop.f32.mrf.mxu0
      %v651 = vpop.f32.mrf.mxu0
      %v652 = vadd.f32 0.0, %v651
      %v653 = vpop.f32.mrf.mxu0
      %654 = vdwg.mxu0
      %v655 = vadd.f32 %v581, %v649
      %v656 = vadd.f32 %v582, %v652
      %v657 = vld [vmem:[%s321] sm:$0xe]
      %s658 = scalar_lea.vmem %s3, 10
      %v659 = vld [vmem:[%s658] sm:$0x3]
      %v661 = vunpack.c.l.b16 %v657
      %v662 = vpack.c.b16 %v592, %v661
      %v663 = vrot.slane %v662, 1
      %v664 = vrot.slane %v595, 1
      %v665 = vsel %vm472, %v663, %v664
      %v667 = vsel %vm371, %v665, 0
      %v670 = vsel %vm375, %v659, 0
      %672 = vmatprep.subr.bf16.mxu0 0
      %673 = vmatpush1.bf16.msra.mxu0 0
      %674 = vmatprep.subr.bf16.mxu0 0
      %675 = vmatpush1.bf16.msra.mxu0 0
      %676 = vmatprep.subr.bf16.mxu0 0
      %677 = vmatpush1.bf16.msra.mxu0 0
      %678 = vmatprep.subr.bf16.mxu0 0
      %679 = vmatpush1.bf16.msra.mxu0 0
      %680 = vmatprep.subr.bf16.mxu0 0
      %681 = vmatpush1.bf16.msra.mxu0 0
      %682 = vmatprep.subr.bf16.mxu0 0
      %683 = vmatpush1.bf16.msra.mxu0 0
      %684 = vmatprep.subr.bf16.mxu0 0
      %685 = vmatpush1.bf16.msra.mxu0 0
      %686 = vmatprep.subr.bf16.mxu0 0
      %687 = vmatpush1.bf16.msra.mxu0 %v670
      %688 = vmatprep.subr.bf16.mxu0 0
      %689 = vmatpush2.bf16.msra.mxu0 0
      %690 = vmatprep.subr.bf16.mxu0 0
      %691 = vmatpush2.bf16.msra.mxu0 0
      %692 = vmatprep.subr.bf16.mxu0 0
      %693 = vmatpush2.bf16.msra.mxu0 0
      %694 = vmatprep.subr.bf16.mxu0 0
      %695 = vmatpush2.bf16.msra.mxu0 0
      %696 = vmatprep.subr.bf16.mxu0 0
      %697 = vmatpush2.bf16.msra.mxu0 0
      %698 = vmatprep.subr.bf16.mxu0 0
      %699 = vmatpush2.bf16.msra.mxu0 0
      %700 = vmatprep.subr.bf16.mxu0 0
      %701 = vmatpush2.bf16.msra.mxu0 0
      %702 = vmatprep.subr.bf16.mxu0 0
      %703 = vmatpush2.bf16.msra.mxu0 0
      %704 = vmatprep.mubr.bf16.mxu0 0
      %705 = vmatmul.mubr.bf16.gmra.mxu0 %v667
      %v706 = vpop.f32.mrf.mxu0
      %v707 = vadd.f32 0.0, %v706
      %v708 = vpop.f32.mrf.mxu0
      %v709 = vpop.f32.mrf.mxu0
      %v710 = vadd.f32 0.0, %v709
      %v711 = vpop.f32.mrf.mxu0
      %712 = vdwg.mxu0
      %v713 = vadd.f32 %v655, %v707
      %v714 = vadd.f32 %v656, %v710
      %v715 = vld [vmem:[%s332] sm:$0xf]
      %v716 = vld [vmem:[%s332 + $0x4] sm:$0xf]
      %s717 = scalar_lea.vmem %s3, 12
      %v718 = vld [vmem:[%s717] sm:$0x3]
      %v721 = vunpack.c.l.b16 %v715
      %v722 = vunpack.c.l.b16 %v716
      %v723 = vpack.c.b16 %v722, %v721
      %v725 = vsel %vm371, %v723, 0
      %v728 = vsel %vm375, %v718, 0
      %730 = vmatprep.subr.bf16.mxu0 0
      %731 = vmatpush1.bf16.msra.mxu0 0
      %732 = vmatprep.subr.bf16.mxu0 0
      %733 = vmatpush1.bf16.msra.mxu0 0
      %734 = vmatprep.subr.bf16.mxu0 0
      %735 = vmatpush1.bf16.msra.mxu0 0
      %736 = vmatprep.subr.bf16.mxu0 0
      %737 = vmatpush1.bf16.msra.mxu0 0
      %738 = vmatprep.subr.bf16.mxu0 0
      %739 = vmatpush1.bf16.msra.mxu0 0
      %740 = vmatprep.subr.bf16.mxu0 0
      %741 = vmatpush1.bf16.msra.mxu0 0
      %742 = vmatprep.subr.bf16.mxu0 0
      %743 = vmatpush1.bf16.msra.mxu0 0
      %744 = vmatprep.subr.bf16.mxu0 0
      %745 = vmatpush1.bf16.msra.mxu0 %v728
      %746 = vmatprep.subr.bf16.mxu0 0
      %747 = vmatpush2.bf16.msra.mxu0 0
      %748 = vmatprep.subr.bf16.mxu0 0
      %749 = vmatpush2.bf16.msra.mxu0 0
      %750 = vmatprep.subr.bf16.mxu0 0
      %751 = vmatpush2.bf16.msra.mxu0 0
      %752 = vmatprep.subr.bf16.mxu0 0
      %753 = vmatpush2.bf16.msra.mxu0 0
      %754 = vmatprep.subr.bf16.mxu0 0
      %755 = vmatpush2.bf16.msra.mxu0 0
      %756 = vmatprep.subr.bf16.mxu0 0
      %757 = vmatpush2.bf16.msra.mxu0 0
      %758 = vmatprep.subr.bf16.mxu0 0
      %759 = vmatpush2.bf16.msra.mxu0 0
      %760 = vmatprep.subr.bf16.mxu0 0
      %761 = vmatpush2.bf16.msra.mxu0 0
      %762 = vmatprep.mubr.bf16.mxu0 0
      %763 = vmatmul.mubr.bf16.gmra.mxu0 %v725
      %v764 = vpop.f32.mrf.mxu0
      %v765 = vadd.f32 0.0, %v764
      %v766 = vpop.f32.mrf.mxu0
      %v767 = vpop.f32.mrf.mxu0
      %v768 = vadd.f32 0.0, %v767
      %v769 = vpop.f32.mrf.mxu0
      %770 = vdwg.mxu0
      %v771 = vadd.f32 %v713, %v765
      %v772 = vadd.f32 %v714, %v768
      %v773 = vld [vmem:[%s332] sm:$0xf]
      %v774 = vld [vmem:[%s332 + $0x4] sm:$0xf]
      %v775 = vld [vmem:[%s332 + $0x8] sm:$0x1]
      %s776 = scalar_lea.vmem %s3, 14
      %v777 = vld [vmem:[%s776] sm:$0x3]
      %v781 = vunpack.c.l.b16 %v773
      %v782 = vunpack.c.l.b16 %v774
      %v783 = vunpack.c.l.b16 %v775
      %v784 = vpack.c.b16 %v782, %v781
      %v785 = vpack.c.b16 %v783, %v783
      %v787 = vshrl.u32 %v784, 16
      %v789 = vshll.u32 %v784, 16
      %v791 = vrot.slane %v789, 1
      %v792 = vor.u32 %v787, %v791
      %v794 = vshll.u32 %v785, 16
      %v796 = vrot.slane %v794, 1
      %v797 = vsel %vm358, %v792, %v796
      %v799 = vsel %vm371, %v797, 0
      %v802 = vsel %vm375, %v777, 0
      %804 = vmatprep.subr.bf16.mxu0 0
      %805 = vmatpush1.bf16.msra.mxu0 0
      %806 = vmatprep.subr.bf16.mxu0 0
      %807 = vmatpush1.bf16.msra.mxu0 0
      %808 = vmatprep.subr.bf16.mxu0 0
      %809 = vmatpush1.bf16.msra.mxu0 0
      %810 = vmatprep.subr.bf16.mxu0 0
      %811 = vmatpush1.bf16.msra.mxu0 0
      %812 = vmatprep.subr.bf16.mxu0 0
      %813 = vmatpush1.bf16.msra.mxu0 0
      %814 = vmatprep.subr.bf16.mxu0 0
      %815 = vmatpush1.bf16.msra.mxu0 0
      %816 = vmatprep.subr.bf16.mxu0 0
      %817 = vmatpush1.bf16.msra.mxu0 0
      %818 = vmatprep.subr.bf16.mxu0 0
      %819 = vmatpush1.bf16.msra.mxu0 %v802
      %820 = vmatprep.subr.bf16.mxu0 0
      %821 = vmatpush2.bf16.msra.mxu0 0
      %822 = vmatprep.subr.bf16.mxu0 0
      %823 = vmatpush2.bf16.msra.mxu0 0
      %824 = vmatprep.subr.bf16.mxu0 0
      %825 = vmatpush2.bf16.msra.mxu0 0
      %826 = vmatprep.subr.bf16.mxu0 0
      %827 = vmatpush2.bf16.msra.mxu0 0
      %828 = vmatprep.subr.bf16.mxu0 0
      %829 = vmatpush2.bf16.msra.mxu0 0
      %830 = vmatprep.subr.bf16.mxu0 0
      %831 = vmatpush2.bf16.msra.mxu0 0
      %832 = vmatprep.subr.bf16.mxu0 0
      %833 = vmatpush2.bf16.msra.mxu0 0
      %834 = vmatprep.subr.bf16.mxu0 0
      %835 = vmatpush2.bf16.msra.mxu0 0
      %836 = vmatprep.mubr.bf16.mxu0 0
      %837 = vmatmul.mubr.bf16.gmra.mxu0 %v799
      %v838 = vpop.f32.mrf.mxu0
      %v839 = vadd.f32 0.0, %v838
      %v840 = vpop.f32.mrf.mxu0
      %v841 = vpop.f32.mrf.mxu0
      %v842 = vadd.f32 0.0, %v841
      %v843 = vpop.f32.mrf.mxu0
      %844 = vdwg.mxu0
      %v845 = vadd.f32 %v771, %v839
      %v846 = vadd.f32 %v772, %v842
      %v847 = vld [vmem:[%s332] sm:$0xe]
      %s848 = scalar_lea.vmem %s3, 16
      %v849 = vld [vmem:[%s848] sm:$0x3]
      %v851 = vunpack.c.l.b16 %v847
      %v852 = vpack.c.b16 %v782, %v851
      %v853 = vrot.slane %v852, 1
      %v854 = vrot.slane %v785, 1
      %v855 = vsel %vm472, %v853, %v854
      %v857 = vsel %vm371, %v855, 0
      %v860 = vsel %vm375, %v849, 0
      %862 = vmatprep.subr.bf16.mxu0 0
      %863 = vmatpush1.bf16.msra.mxu0 0
      %864 = vmatprep.subr.bf16.mxu0 0
      %865 = vmatpush1.bf16.msra.mxu0 0
      %866 = vmatprep.subr.bf16.mxu0 0
      %867 = vmatpush1.bf16.msra.mxu0 0
      %868 = vmatprep.subr.bf16.mxu0 0
      %869 = vmatpush1.bf16.msra.mxu0 0
      %870 = vmatprep.subr.bf16.mxu0 0
      %871 = vmatpush1.bf16.msra.mxu0 0
      %872 = vmatprep.subr.bf16.mxu0 0
      %873 = vmatpush1.bf16.msra.mxu0 0
      %874 = vmatprep.subr.bf16.mxu0 0
      %875 = vmatpush1.bf16.msra.mxu0 0
      %876 = vmatprep.subr.bf16.mxu0 0
      %877 = vmatpush1.bf16.msra.mxu0 %v860
      %878 = vmatprep.subr.bf16.mxu0 0
      %879 = vmatpush2.bf16.msra.mxu0 0
      %880 = vmatprep.subr.bf16.mxu0 0
      %881 = vmatpush2.bf16.msra.mxu0 0
      %882 = vmatprep.subr.bf16.mxu0 0
      %883 = vmatpush2.bf16.msra.mxu0 0
      %884 = vmatprep.subr.bf16.mxu0 0
      %885 = vmatpush2.bf16.msra.mxu0 0
      %886 = vmatprep.subr.bf16.mxu0 0
      %887 = vmatpush2.bf16.msra.mxu0 0
      %888 = vmatprep.subr.bf16.mxu0 0
      %889 = vmatpush2.bf16.msra.mxu0 0
      %890 = vmatprep.subr.bf16.mxu0 0
      %891 = vmatpush2.bf16.msra.mxu0 0
      %892 = vmatprep.subr.bf16.mxu0 0
      %893 = vmatpush2.bf16.msra.mxu0 0
      %894 = vmatprep.mubr.bf16.mxu0 0
      %895 = vmatmul.mubr.bf16.gmra.mxu0 %v857
      %v896 = vpop.f32.mrf.mxu0
      %v897 = vadd.f32 0.0, %v896
      %v898 = vpop.f32.mrf.mxu0
      %v899 = vpop.f32.mrf.mxu0
      %v900 = vadd.f32 0.0, %v899
      %v901 = vpop.f32.mrf.mxu0
      %902 = vdwg.mxu0
      %v903 = vadd.f32 %v845, %v897
      %v904 = vadd.f32 %v846, %v900
      %v905 = vld [vmem:[%s4] sm:$0x1]
      %v907 = vlaneseq
      %v908 = vshrl.u32 %v907, 7
      %v909 = vsub.s32 0, %v908
      %v910 = vrot.slane %v905, %v909
      %v912 = vadd.f32 %v903, %v910
      %v913 = vadd.f32 %v904, %v910
      %v914 = vmax.f32 %v912, 0.0
      %v915 = vmax.f32 %v913, 0.0
      %916 = vst [vmem:[%s342] sm:$0xff] %v914
      %917 = vst [vmem:[%s342 + $0x8] sm:$0xff] %v915
      %p918 = scmp.lt.s32.totalorder %s20, 1
      %s919 = scalar_select %p918, %s20, 1
      %p920 = scmp.lt.s32.totalorder %s21, 15
      %s921 = scalar_select %p920, %s21, 15
      %s922 = smul.addr %s921, 2
      %s923 = smul.addr %s919, 32
      %s924 = sadd.s32 %s922, %s923
      %s925 = smul.addr %s924, 8
      %s926 = scalar_lea.vmem %s5, %s925
      // Predicated region
      $region41: #{conv_layer_forward.1} parent=39 // pred_check
        %p927 = pneg %p178
      $region42: #{conv_layer_forward.1} parent=39 // pred_check_branch
        %929 = sbr.rel (%p927) target = $region44
      $region43: #{conv_layer_forward.1} parent=39 // pred_region
        _
      $region44: #{conv_layer_forward.1} parent=39 // pred_fallthru
        _
    $region40: #{conv_layer_forward.1} parent=5 // pred_fallthru
      _
    %p930 = scmp.le.s32.totalorder 2, %s11
    // Predicated region
    $region45: #{conv_layer_forward.1} parent=5 // pred_check
      %p931 = pneg %p930
    $region46: #{conv_layer_forward.1} parent=5 // pred_check_branch
      %933 = sbr.rel (%p931) target = $region48
    $region47: #{conv_layer_forward.1} parent=5 // pred_region
      %s934 = ssub.s32 %s11, 2
      // Predicated region
      $region49: #{conv_layer_forward.1} parent=47 // pred_check
        %p935 = pneg %p184
      $region50: #{conv_layer_forward.1} parent=47 // pred_check_branch
        %937 = sbr.rel (%p935) target = $region52
      $region51: #{conv_layer_forward.1} parent=47 // pred_region
        %p938 = scmp.lt.s32.totalorder %s22, 1
        %s939 = scalar_select %p938, %s22, 1
        %p940 = scmp.lt.s32.totalorder %s23, 15
        %s941 = scalar_select %p940, %s23, 15
        %s942 = smul.addr %s941, 2
        %s943 = smul.addr %s939, 32
        %s944 = sadd.s32 %s942, %s943
        %s945 = smul.addr %s944, 8
        %s946 = scalar_lea.vmem %s5, %s945
      $region52: #{conv_layer_forward.1} parent=47 // pred_fallthru
        _
    $region48: #{conv_layer_forward.1} parent=5 // pred_fallthru
      _
  $region6: #{conv_layer_forward.1} parent=0 // loop_footer
    %s15 = sadd.s32 1, %s11
  $region7: #{conv_layer_forward.1} parent=0 // loop_footer_branch
    %10 = sbr.rel target = $region3
  $region8: #{conv_layer_forward.1} parent=0 // loop_exit
    _

</llo_original>
